<compile_context>
chip_gen: v7x
topology: tpu7x:2x2x1
jax: 0.10.0
libtpu: 0.0.40
codegen_flags: <defaults>
</compile_context>

<pallas_src>
import functools

import jax
import jax.numpy as jnp
from jax.experimental import pallas as pl
from jax.experimental.pallas import tpu as pltpu


def mlp_kernel(x_ref,
               w1_ref, b1_ref,
               w2_ref, b2_ref,
               w3_ref, b3_ref,
               w4_ref, b4_ref,
               w5_ref, b5_ref,
               o_ref):
    """One batch tile, transposed layout: activations are [features, TB]."""
    h = x_ref[...]  # [13, TB], f32

    h = jnp.dot(w1_ref[...], h, preferred_element_type=jnp.float32) + b1_ref[...]
    h = jnp.maximum(h, 0.0)                       # [60, TB]

    h = jnp.dot(w2_ref[...], h, preferred_element_type=jnp.float32) + b2_ref[...]
    h = jnp.maximum(h, 0.0)                       # [60, TB]

    h = jnp.dot(w3_ref[...], h, preferred_element_type=jnp.float32) + b3_ref[...]
    h = jnp.maximum(h, 0.0)                       # [60, TB]

    h = jnp.dot(w4_ref[...], h, preferred_element_type=jnp.float32) + b4_ref[...]
    h = jnp.maximum(h, 0.0)                       # [50, TB]

    y = jnp.dot(w5_ref[...], h, preferred_element_type=jnp.float32) + b5_ref[...]

    o_ref[...] = y.astype(o_ref.dtype)            # [1, TB] -> dense lane store


@functools.partial(jax.jit, static_argnames=("max_tb",))
def classifier_forward(x, params, max_tb=1024):
    """x: [B, 13] f32. params: list of (W[out, in], b[out, 1]) in f32."""
    B, F = x.shape

    # Tile size on the lane axis: multiple of 128, capped at max_tb.
    TB = min(max_tb, pl.cdiv(B, 128) * 128)
    B_pad = pl.cdiv(B, TB) * TB

    x_pad = x if B_pad == B else jnp.pad(x, ((0, B_pad - B), (0, 0)))
    x_t = x_pad.T  # [13, B_pad]  (layout plumbing only; done once in wrapper)

    flat = []
    in_specs = [pl.BlockSpec((F, TB), lambda i: (0, i))]
    for w, b in params:
        flat.extend([w, b])
        # Constant index_map -> weight/bias DMA'd once, resident across tiles.
        in_specs.append(pl.BlockSpec(w.shape, lambda i: (0, 0)))
        in_specs.append(pl.BlockSpec(b.shape, lambda i: (0, 0)))

    out_spec = pl.BlockSpec((1, TB), lambda i: (0, i))

    per_sample_flops = 2 * (13 * 60 + 60 * 60 + 60 * 60 + 60 * 50 + 50 * 1)
    weight_bytes = sum(w.size * 4 + b.size * 4 for w, b in params)
    cost = pl.CostEstimate(
        flops=per_sample_flops * B_pad,
        transcendentals=0,
        bytes_accessed=x_t.size * 4 + B_pad * 4 + weight_bytes,
    )

    out = pl.pallas_call(
        mlp_kernel,
        out_shape=jax.ShapeDtypeStruct((1, B_pad), jnp.float32),
        grid=(B_pad // TB,),
        in_specs=in_specs,
        out_specs=out_spec,
        compiler_params=pltpu.CompilerParams(
            dimension_semantics=("parallel",)),
        cost_estimate=cost,
    )(x_t, *flat)

    return out[0, :B].reshape(B, 1)


def init_params(key):
    """Deterministic init matching nn.Linear shapes: W [out, in], b [out, 1]."""
    sizes = [(13, 60), (60, 60), (60, 60), (60, 50), (50, 1)]
    params = []
    for (fan_in, fan_out) in sizes:
        key, kw, kb = jax.random.split(key, 3)
        bound = 1.0 / jnp.sqrt(jnp.float32(fan_in))
        w = jax.random.uniform(kw, (fan_out, fan_in), jnp.float32, -bound, bound)
        b = jax.random.uniform(kb, (fan_out, 1), jnp.float32, -bound, bound)
        params.append((w, b))
    return params


def reference_forward(x, params):
    h = x
    for i, (w, b) in enumerate(params):
        h = h @ w.T + b.reshape(1, -1)
        if i < len(params) - 1:
            h = jnp.maximum(h, 0.0)
    return h


if __name__ == "__main__":
    key = jax.random.PRNGKey(0)
    key, kx = jax.random.split(key)

    B = 8
    x = jax.random.normal(kx, (B, 13), jnp.float32)
    params = init_params(key)

    out = classifier_forward(x, params)
    out = jax.block_until_ready(out)

    ref = reference_forward(x, params)
    assert out.shape == (B, 1), out.shape
    assert jnp.allclose(out, ref, atol=1e-5, rtol=1e-5), (out, ref)

    print("KERNEL_OK")
</pallas_src>

<mosaic_0001>
module attributes {stable_mosaic.version = 11 : i64} {
  func.func @mlp_kernel(%arg0: i32, %arg1: memref<13x128xf32, #tpu.memory_space<vmem>>, %arg2: memref<60x13xf32, #tpu.memory_space<vmem>>, %arg3: memref<60x1xf32, #tpu.memory_space<vmem>>, %arg4: memref<60x60xf32, #tpu.memory_space<vmem>>, %arg5: memref<60x1xf32, #tpu.memory_space<vmem>>, %arg6: memref<60x60xf32, #tpu.memory_space<vmem>>, %arg7: memref<60x1xf32, #tpu.memory_space<vmem>>, %arg8: memref<50x60xf32, #tpu.memory_space<vmem>>, %arg9: memref<50x1xf32, #tpu.memory_space<vmem>>, %arg10: memref<1x50xf32, #tpu.memory_space<vmem>>, %arg11: memref<1x1xf32, #tpu.memory_space<vmem>>, %arg12: memref<1x128xf32, #tpu.memory_space<vmem>>) attributes {dimension_semantics = [#tpu.dimension_semantics<parallel>], iteration_bounds = array<i64: 1>, scalar_prefetch = 0 : i64, scratch_operands = 0 : i64, tpu.core_type = #tpu.core_type<tc>, window_params = [{transform_indices = @transform_0, window_bounds = array<i64: 13, 128>}, {pipeline_mode = #tpu.pipeline_mode<synchronous>, transform_indices = @transform_1, window_bounds = array<i64: 60, 13>}, {pipeline_mode = #tpu.pipeline_mode<synchronous>, transform_indices = @transform_2, window_bounds = array<i64: 60, 1>}, {pipeline_mode = #tpu.pipeline_mode<synchronous>, transform_indices = @transform_3, window_bounds = array<i64: 60, 60>}, {pipeline_mode = #tpu.pipeline_mode<synchronous>, transform_indices = @transform_4, window_bounds = array<i64: 60, 1>}, {pipeline_mode = #tpu.pipeline_mode<synchronous>, transform_indices = @transform_5, window_bounds = array<i64: 60, 60>}, {pipeline_mode = #tpu.pipeline_mode<synchronous>, transform_indices = @transform_6, window_bounds = array<i64: 60, 1>}, {pipeline_mode = #tpu.pipeline_mode<synchronous>, transform_indices = @transform_7, window_bounds = array<i64: 50, 60>}, {pipeline_mode = #tpu.pipeline_mode<synchronous>, transform_indices = @transform_8, window_bounds = array<i64: 50, 1>}, {pipeline_mode = #tpu.pipeline_mode<synchronous>, transform_indices = @transform_9, window_bounds = array<i64: 1, 50>}, {pipeline_mode = #tpu.pipeline_mode<synchronous>, transform_indices = @transform_10, window_bounds = array<i64: 1, 1>}, {transform_indices = @transform_11, window_bounds = array<i64: 1, 128>}]} {
    %c0 = arith.constant 0 : index
    %c0_0 = arith.constant 0 : index
    %0 = vector.load %arg1[%c0, %c0_0] : memref<13x128xf32, #tpu.memory_space<vmem>>, vector<13x128xf32>
    %c0_1 = arith.constant 0 : index
    %c0_2 = arith.constant 0 : index
    %1 = vector.load %arg2[%c0_1, %c0_2] : memref<60x13xf32, #tpu.memory_space<vmem>>, vector<60x13xf32>
    %cst = arith.constant dense<0.000000e+00> : vector<60x128xf32>
    %2 = tpu.matmul %1, %0, %cst {dimension_numbers = #tpu.dot_dimension_numbers<[1], [0], [0], [1], [0, 0, 1, 1], [], []>} : vector<60x13xf32>, vector<13x128xf32>, vector<60x128xf32> -> vector<60x128xf32>
    %c0_3 = arith.constant 0 : index
    %c0_4 = arith.constant 0 : index
    %3 = vector.load %arg3[%c0_3, %c0_4] : memref<60x1xf32, #tpu.memory_space<vmem>>, vector<60x1xf32>
    %4 = vector.broadcast %3 : vector<60x1xf32> to vector<60x128xf32>
    %5 = arith.addf %2, %4 : vector<60x128xf32>
    %cst_5 = arith.constant 0.000000e+00 : f32
    %6 = vector.broadcast %cst_5 : f32 to vector<60x128xf32>
    %7 = arith.maximumf %5, %6 : vector<60x128xf32>
    %c0_6 = arith.constant 0 : index
    %c0_7 = arith.constant 0 : index
    %8 = vector.load %arg4[%c0_6, %c0_7] : memref<60x60xf32, #tpu.memory_space<vmem>>, vector<60x60xf32>
    %cst_8 = arith.constant dense<0.000000e+00> : vector<60x128xf32>
    %9 = tpu.matmul %8, %7, %cst_8 {dimension_numbers = #tpu.dot_dimension_numbers<[1], [0], [0], [1], [0, 0, 1, 1], [], []>} : vector<60x60xf32>, vector<60x128xf32>, vector<60x128xf32> -> vector<60x128xf32>
    %c0_9 = arith.constant 0 : index
    %c0_10 = arith.constant 0 : index
    %10 = vector.load %arg5[%c0_9, %c0_10] : memref<60x1xf32, #tpu.memory_space<vmem>>, vector<60x1xf32>
    %11 = vector.broadcast %10 : vector<60x1xf32> to vector<60x128xf32>
    %12 = arith.addf %9, %11 : vector<60x128xf32>
    %cst_11 = arith.constant 0.000000e+00 : f32
    %13 = vector.broadcast %cst_11 : f32 to vector<60x128xf32>
    %14 = arith.maximumf %12, %13 : vector<60x128xf32>
    %c0_12 = arith.constant 0 : index
    %c0_13 = arith.constant 0 : index
    %15 = vector.load %arg6[%c0_12, %c0_13] : memref<60x60xf32, #tpu.memory_space<vmem>>, vector<60x60xf32>
    %cst_14 = arith.constant dense<0.000000e+00> : vector<60x128xf32>
    %16 = tpu.matmul %15, %14, %cst_14 {dimension_numbers = #tpu.dot_dimension_numbers<[1], [0], [0], [1], [0, 0, 1, 1], [], []>} : vector<60x60xf32>, vector<60x128xf32>, vector<60x128xf32> -> vector<60x128xf32>
    %c0_15 = arith.constant 0 : index
    %c0_16 = arith.constant 0 : index
    %17 = vector.load %arg7[%c0_15, %c0_16] : memref<60x1xf32, #tpu.memory_space<vmem>>, vector<60x1xf32>
    %18 = vector.broadcast %17 : vector<60x1xf32> to vector<60x128xf32>
    %19 = arith.addf %16, %18 : vector<60x128xf32>
    %cst_17 = arith.constant 0.000000e+00 : f32
    %20 = vector.broadcast %cst_17 : f32 to vector<60x128xf32>
    %21 = arith.maximumf %19, %20 : vector<60x128xf32>
    %c0_18 = arith.constant 0 : index
    %c0_19 = arith.constant 0 : index
    %22 = vector.load %arg8[%c0_18, %c0_19] : memref<50x60xf32, #tpu.memory_space<vmem>>, vector<50x60xf32>
    %cst_20 = arith.constant dense<0.000000e+00> : vector<50x128xf32>
    %23 = tpu.matmul %22, %21, %cst_20 {dimension_numbers = #tpu.dot_dimension_numbers<[1], [0], [0], [1], [0, 0, 1, 1], [], []>} : vector<50x60xf32>, vector<60x128xf32>, vector<50x128xf32> -> vector<50x128xf32>
    %c0_21 = arith.constant 0 : index
    %c0_22 = arith.constant 0 : index
    %24 = vector.load %arg9[%c0_21, %c0_22] : memref<50x1xf32, #tpu.memory_space<vmem>>, vector<50x1xf32>
    %25 = vector.broadcast %24 : vector<50x1xf32> to vector<50x128xf32>
    %26 = arith.addf %23, %25 : vector<50x128xf32>
    %cst_23 = arith.constant 0.000000e+00 : f32
    %27 = vector.broadcast %cst_23 : f32 to vector<50x128xf32>
    %28 = arith.maximumf %26, %27 : vector<50x128xf32>
    %c0_24 = arith.constant 0 : index
    %c0_25 = arith.constant 0 : index
    %29 = vector.load %arg10[%c0_24, %c0_25] : memref<1x50xf32, #tpu.memory_space<vmem>>, vector<1x50xf32>
    %cst_26 = arith.constant dense<0.000000e+00> : vector<1x128xf32>
    %30 = tpu.matmul %29, %28, %cst_26 {dimension_numbers = #tpu.dot_dimension_numbers<[1], [0], [0], [1], [0, 0, 1, 1], [], []>} : vector<1x50xf32>, vector<50x128xf32>, vector<1x128xf32> -> vector<1x128xf32>
    %c0_27 = arith.constant 0 : index
    %c0_28 = arith.constant 0 : index
    %31 = vector.load %arg11[%c0_27, %c0_28] : memref<1x1xf32, #tpu.memory_space<vmem>>, vector<1x1xf32>
    %32 = vector.broadcast %31 : vector<1x1xf32> to vector<1x128xf32>
    %33 = arith.addf %30, %32 : vector<1x128xf32>
    %c0_29 = arith.constant 0 : index
    %c0_30 = arith.constant 0 : index
    %34 = vector.load %arg12[%c0_29, %c0_30] : memref<1x128xf32, #tpu.memory_space<vmem>>, vector<1x128xf32>
    tpu.vector_store %arg12[%c0_29, %c0_30], %33 {strides = array<i32>} : memref<1x128xf32, #tpu.memory_space<vmem>>, vector<1x128xf32>,
    return
  }
  func.func @transform_0(%arg0: i32) -> (i32, i32) {
    %c0_i32 = arith.constant 0 : i32
    %c0_i32_0 = arith.constant 0 : i32
    return %c0_i32, %arg0 : i32, i32
  }
  func.func @transform_1(%arg0: i32) -> (i32, i32) {
    %c0_i32 = arith.constant 0 : i32
    %c0_i32_0 = arith.constant 0 : i32
    %c0_i32_1 = arith.constant 0 : i32
    return %c0_i32, %c0_i32_0 : i32, i32
  }
  func.func @transform_2(%arg0: i32) -> (i32, i32) {
    %c0_i32 = arith.constant 0 : i32
    %c0_i32_0 = arith.constant 0 : i32
    %c0_i32_1 = arith.constant 0 : i32
    return %c0_i32, %c0_i32_0 : i32, i32
  }
  func.func @transform_3(%arg0: i32) -> (i32, i32) {
    %c0_i32 = arith.constant 0 : i32
    %c0_i32_0 = arith.constant 0 : i32
    %c0_i32_1 = arith.constant 0 : i32
    return %c0_i32, %c0_i32_0 : i32, i32
  }
  func.func @transform_4(%arg0: i32) -> (i32, i32) {
    %c0_i32 = arith.constant 0 : i32
    %c0_i32_0 = arith.constant 0 : i32
    %c0_i32_1 = arith.constant 0 : i32
    return %c0_i32, %c0_i32_0 : i32, i32
  }
  func.func @transform_5(%arg0: i32) -> (i32, i32) {
    %c0_i32 = arith.constant 0 : i32
    %c0_i32_0 = arith.constant 0 : i32
    %c0_i32_1 = arith.constant 0 : i32
    return %c0_i32, %c0_i32_0 : i32, i32
  }
  func.func @transform_6(%arg0: i32) -> (i32, i32) {
    %c0_i32 = arith.constant 0 : i32
    %c0_i32_0 = arith.constant 0 : i32
    %c0_i32_1 = arith.constant 0 : i32
    return %c0_i32, %c0_i32_0 : i32, i32
  }
  func.func @transform_7(%arg0: i32) -> (i32, i32) {
    %c0_i32 = arith.constant 0 : i32
    %c0_i32_0 = arith.constant 0 : i32
    %c0_i32_1 = arith.constant 0 : i32
    return %c0_i32, %c0_i32_0 : i32, i32
  }
  func.func @transform_8(%arg0: i32) -> (i32, i32) {
    %c0_i32 = arith.constant 0 : i32
    %c0_i32_0 = arith.constant 0 : i32
    %c0_i32_1 = arith.constant 0 : i32
    return %c0_i32, %c0_i32_0 : i32, i32
  }
  func.func @transform_9(%arg0: i32) -> (i32, i32) {
    %c0_i32 = arith.constant 0 : i32
    %c0_i32_0 = arith.constant 0 : i32
    %c0_i32_1 = arith.constant 0 : i32
    return %c0_i32, %c0_i32_0 : i32, i32
  }
  func.func @transform_10(%arg0: i32) -> (i32, i32) {
    %c0_i32 = arith.constant 0 : i32
    %c0_i32_0 = arith.constant 0 : i32
    %c0_i32_1 = arith.constant 0 : i32
    return %c0_i32, %c0_i32_0 : i32, i32
  }
  func.func @transform_11(%arg0: i32) -> (i32, i32) {
    %c0_i32 = arith.constant 0 : i32
    %c0_i32_0 = arith.constant 0 : i32
    return %c0_i32, %arg0 : i32, i32
  }
}

</mosaic_0001>

<llo_original>
// kernel: classifier_forward.1
$region0: #{classifier_forward.1}
  #allocation0 [shape = 'u32[]', space=smem, size = 0x4, offset = 0x4, fixed_abs, tag = 'smem constant byte address 0x4 - core index']
  #allocation1 [shape = 'u32[144,128]{1,0:T(1,128)}', space=vmem, size = 0x12000, scoped, tag = 'internal scratch']
  #allocation2 [shape = 'f32[1,1]{1,0:T(1,128)S(1)}', space=vmem, size = 0x200, scoped, tag = 'scoped memory for classifier_forward.1']
  %s0 = inlined_call_operand.vmem [shape: f32[13,128], index: 0, kind: input, shape index: {}]
  %s1 = inlined_call_operand.vmem [shape: f32[60,13], index: 1, kind: input, shape index: {}]
  %s2 = inlined_call_operand.vmem [shape: f32[60,1], index: 2, kind: input, shape index: {}]
  %s3 = inlined_call_operand.vmem [shape: f32[60,60], index: 3, kind: input, shape index: {}]
  %s4 = inlined_call_operand.vmem [shape: f32[60,1], index: 4, kind: input, shape index: {}]
  %s5 = inlined_call_operand.vmem [shape: f32[60,60], index: 5, kind: input, shape index: {}]
  %s6 = inlined_call_operand.vmem [shape: f32[60,1], index: 6, kind: input, shape index: {}]
  %s7 = inlined_call_operand.vmem [shape: f32[50,60], index: 7, kind: input, shape index: {}]
  %s8 = inlined_call_operand.vmem [shape: f32[50,1], index: 8, kind: input, shape index: {}]
  %s9 = inlined_call_operand.vmem [shape: f32[1,50], index: 9, kind: input, shape index: {}]
  %s10 = inlined_call_operand.<no memory space> [shape: f32[1,1], index: 10, kind: input, shape index: {}]
  %s11 = inlined_call_operand.vmem [shape: f32[1,128], index: 11, kind: output, shape index: {}]
  %s12 = sld [smem:[#allocation0]]
  $region54: #{classifier_forward.1} parent=0
    _
  %s14 = ssub.s32 1, %s12
  %s15 = scalar_select 0, %s14, %s12
  %v16 = vstv %s10
  %17 = vst [vmem:[#allocation2] sm:$0x1] %v16
  // Predicated region
  $region2: #{classifier_forward.1} parent=0 // pred_check
    _
  $region3: #{classifier_forward.1} parent=0 // pred_check_branch
    %19 = sbr.rel (0) target = $region5
  $region4: #{classifier_forward.1} parent=0 // pred_region
    _
  $region5: #{classifier_forward.1} parent=0 // pred_fallthru
    _
  // Predicated region
  $region6: #{classifier_forward.1} parent=0 // pred_check
    _
  $region7: #{classifier_forward.1} parent=0 // pred_check_branch
    %21 = sbr.rel (0) target = $region9
  $region8: #{classifier_forward.1} parent=0 // pred_region
    _
  $region9: #{classifier_forward.1} parent=0 // pred_fallthru
    _
  // Predicated region
  $region10: #{classifier_forward.1} parent=0 // pred_check
    _
  $region11: #{classifier_forward.1} parent=0 // pred_check_branch
    %23 = sbr.rel (0) target = $region13
  $region12: #{classifier_forward.1} parent=0 // pred_region
    _
  $region13: #{classifier_forward.1} parent=0 // pred_fallthru
    _
  // Predicated region
  $region14: #{classifier_forward.1} parent=0 // pred_check
    _
  $region15: #{classifier_forward.1} parent=0 // pred_check_branch
    %25 = sbr.rel (0) target = $region17
  $region16: #{classifier_forward.1} parent=0 // pred_region
    _
  $region17: #{classifier_forward.1} parent=0 // pred_fallthru
    _
  // Predicated region
  $region18: #{classifier_forward.1} parent=0 // pred_check
    _
  $region19: #{classifier_forward.1} parent=0 // pred_check_branch
    %27 = sbr.rel (0) target = $region21
  $region20: #{classifier_forward.1} parent=0 // pred_region
    _
  $region21: #{classifier_forward.1} parent=0 // pred_fallthru
    _
  // Predicated region
  $region22: #{classifier_forward.1} parent=0 // pred_check
    _
  $region23: #{classifier_forward.1} parent=0 // pred_check_branch
    %29 = sbr.rel (0) target = $region25
  $region24: #{classifier_forward.1} parent=0 // pred_region
    _
  $region25: #{classifier_forward.1} parent=0 // pred_fallthru
    _
  // Predicated region
  $region26: #{classifier_forward.1} parent=0 // pred_check
    _
  $region27: #{classifier_forward.1} parent=0 // pred_check_branch
    %31 = sbr.rel (0) target = $region29
  $region28: #{classifier_forward.1} parent=0 // pred_region
    _
  $region29: #{classifier_forward.1} parent=0 // pred_fallthru
    _
  // Predicated region
  $region30: #{classifier_forward.1} parent=0 // pred_check
    _
  $region31: #{classifier_forward.1} parent=0 // pred_check_branch
    %33 = sbr.rel (0) target = $region33
  $region32: #{classifier_forward.1} parent=0 // pred_region
    _
  $region33: #{classifier_forward.1} parent=0 // pred_fallthru
    _
  // Predicated region
  $region34: #{classifier_forward.1} parent=0 // pred_check
    _
  $region35: #{classifier_forward.1} parent=0 // pred_check_branch
    %35 = sbr.rel (0) target = $region37
  $region36: #{classifier_forward.1} parent=0 // pred_region
    _
  $region37: #{classifier_forward.1} parent=0 // pred_fallthru
    _
  // Predicated region
  $region38: #{classifier_forward.1} parent=0 // pred_check
    _
  $region39: #{classifier_forward.1} parent=0 // pred_check_branch
    %37 = sbr.rel (0) target = $region41
  $region40: #{classifier_forward.1} parent=0 // pred_region
    _
  $region41: #{classifier_forward.1} parent=0 // pred_fallthru
    _
  // Predicated region
  $region42: #{classifier_forward.1} parent=0 // pred_check
    _
  $region43: #{classifier_forward.1} parent=0 // pred_check_branch
    %39 = sbr.rel (0) target = $region45
  $region44: #{classifier_forward.1} parent=0 // pred_region
    _
  $region45: #{classifier_forward.1} parent=0 // pred_fallthru
    _
  %v40 = vld [vmem:[%s0] sm:$0xff]
  %v41 = vld [vmem:[%s0 + $0x8] sm:$0x1f]
  %v42 = vld [vmem:[%s1] sm:$0xff]
  %v43 = vld [vmem:[%s1 + $0x8] sm:$0xff]
  %v44 = vld [vmem:[%s1 + $0x10] sm:$0xff]
  %v45 = vld [vmem:[%s1 + $0x18] sm:$0xff]
  %v46 = vld [vmem:[%s1 + $0x20] sm:$0xff]
  %v47 = vld [vmem:[%s1 + $0x28] sm:$0xff]
  %v48 = vld [vmem:[%s1 + $0x30] sm:$0xff]
  %v49 = vld [vmem:[%s1 + $0x38] sm:$0xf]
  %v50 = vld [vmem:[%s2] sm:$0xff]
  %v51 = vld [vmem:[%s2 + $0x8] sm:$0xff]
  %v52 = vld [vmem:[%s2 + $0x10] sm:$0xff]
  %v53 = vld [vmem:[%s2 + $0x18] sm:$0xff]
  %v54 = vld [vmem:[%s2 + $0x20] sm:$0xff]
  %v55 = vld [vmem:[%s2 + $0x28] sm:$0xff]
  %v56 = vld [vmem:[%s2 + $0x30] sm:$0xff]
  %v57 = vld [vmem:[%s2 + $0x38] sm:$0xf]
  %59 = vset.pattern.permute.xlu0 0
  %60 = vperm.xlu0 %59, %v50
  %v61 = vpop.permute.xlu0 %60
  %64 = vset.pattern.permute.xlu0 0
  %65 = vperm.xlu0 %64, %v51
  %v66 = vpop.permute.xlu0 %65
  %69 = vset.pattern.permute.xlu0 0
  %70 = vperm.xlu0 %69, %v52
  %v71 = vpop.permute.xlu0 %70
  %74 = vset.pattern.permute.xlu0 0
  %75 = vperm.xlu0 %74, %v53
  %v76 = vpop.permute.xlu0 %75
  %79 = vset.pattern.permute.xlu0 0
  %80 = vperm.xlu0 %79, %v54
  %v81 = vpop.permute.xlu0 %80
  %84 = vset.pattern.permute.xlu0 0
  %85 = vperm.xlu0 %84, %v55
  %v86 = vpop.permute.xlu0 %85
  %89 = vset.pattern.permute.xlu0 0
  %90 = vperm.xlu0 %89, %v56
  %v91 = vpop.permute.xlu0 %90
  %94 = vset.pattern.permute.xlu0 0
  %95 = vperm.xlu0 %94, %v57
  %v96 = vpop.permute.xlu0 %95
  %vm98 = vcmask 105472
  %v100 = vsel %vm98, %v42, 0
  %v103 = vsel %vm98, %v43, 0
  %v106 = vsel %vm98, %v44, 0
  %v109 = vsel %vm98, %v45, 0
  %v112 = vsel %vm98, %v46, 0
  %v115 = vsel %vm98, %v47, 0
  %v118 = vsel %vm98, %v48, 0
  %v121 = vsel %vm98, %v49, 0
  %vm123 = vcmask 1044480
  %v125 = vsel %vm123, %v41, 0
  %127 = vmatprep.subr.mxu0 0.0
  %128 = vmatpush1.msra.mxu0 %v40
  %129 = vmatprep.subr.mxu0 0.0
  %130 = vmatpush1.msra.mxu0 %v125
  %131 = vmatprep.subr.mxu0 0.0
  %132 = vmatpush1.msra.mxu0 0.0
  %133 = vmatprep.subr.mxu0 0.0
  %134 = vmatpush1.msra.mxu0 0.0
  %135 = vmatprep.subr.mxu0 0.0
  %136 = vmatpush1.msra.mxu0 0.0
  %137 = vmatprep.subr.mxu0 0.0
  %138 = vmatpush1.msra.mxu0 0.0
  %139 = vmatprep.subr.mxu0 0.0
  %140 = vmatpush1.msra.mxu0 0.0
  %141 = vmatprep.subr.mxu0 0.0
  %142 = vmatpush1.msra.mxu0 0.0
  %143 = vmatprep.subr.mxu0 0.0
  %144 = vmatpush1.msra.mxu0 0.0
  %145 = vmatprep.subr.mxu0 0.0
  %146 = vmatpush1.msra.mxu0 0.0
  %147 = vmatprep.subr.mxu0 0.0
  %148 = vmatpush1.msra.mxu0 0.0
  %149 = vmatprep.subr.mxu0 0.0
  %150 = vmatpush1.msra.mxu0 0.0
  %151 = vmatprep.subr.mxu0 0.0
  %152 = vmatpush1.msra.mxu0 0.0
  %153 = vmatprep.subr.mxu0 0.0
  %154 = vmatpush1.msra.mxu0 0.0
  %155 = vmatprep.subr.mxu0 0.0
  %156 = vmatpush1.msra.mxu0 0.0
  %157 = vmatprep.subr.mxu0 0.0
  %158 = vmatpush1.msra.mxu0 0.0
  %159 = vmatprep.subr.mxu0 0.0
  %160 = vmatpush1.msra.mxu0 0.0
  %161 = vmatprep.subr.mxu0 0.0
  %162 = vmatpush1.msra.mxu0 0.0
  %163 = vmatprep.subr.mxu0 0.0
  %164 = vmatpush1.msra.mxu0 0.0
  %165 = vmatprep.subr.mxu0 0.0
  %166 = vmatpush1.msra.mxu0 0.0
  %167 = vmatprep.subr.mxu0 0.0
  %168 = vmatpush1.msra.mxu0 0.0
  %169 = vmatprep.subr.mxu0 0.0
  %170 = vmatpush1.msra.mxu0 0.0
  %171 = vmatprep.subr.mxu0 0.0
  %172 = vmatpush1.msra.mxu0 0.0
  %173 = vmatprep.subr.mxu0 0.0
  %174 = vmatpush1.msra.mxu0 0.0
  %175 = vmatprep.subr.mxu0 0.0
  %176 = vmatpush1.msra.mxu0 0.0
  %177 = vmatprep.subr.mxu0 0.0
  %178 = vmatpush1.msra.mxu0 0.0
  %179 = vmatprep.subr.mxu0 0.0
  %180 = vmatpush1.msra.mxu0 0.0
  %181 = vmatprep.subr.mxu0 0.0
  %182 = vmatpush1.msra.mxu0 0.0
  %183 = vmatprep.subr.mxu0 0.0
  %184 = vmatpush1.msra.mxu0 0.0
  %185 = vmatprep.subr.mxu0 0.0
  %186 = vmatpush1.msra.mxu0 0.0
  %187 = vmatprep.subr.mxu0 0.0
  %188 = vmatpush1.msra.mxu0 0.0
  %189 = vmatprep.subr.mxu0 0.0
  %190 = vmatpush1.msra.mxu0 0.0
  %191 = vmatprep.mubr.f32.mxu0 0.0
  %192 = vmatmul.mubr.f32.gmra.mrb[0].mxu0 %v100
  %v193 = vpop.f32.mrb[0].mxu0
  %v194 = vadd.f32 %v61, %v193
  %v195 = vpop.f32.mrb[0].mxu0
  %196 = vmatprep.mubr.f32.mxu0 0.0
  %197 = vmatmul.mubr.f32.gmra.mrb[0].mxu0 %v103
  %v198 = vpop.f32.mrb[0].mxu0
  %v199 = vadd.f32 %v66, %v198
  %v200 = vpop.f32.mrb[0].mxu0
  %201 = vmatprep.mubr.f32.mxu0 0.0
  %202 = vmatmul.mubr.f32.gmra.mrb[0].mxu0 %v106
  %v203 = vpop.f32.mrb[0].mxu0
  %v204 = vadd.f32 %v71, %v203
  %v205 = vpop.f32.mrb[0].mxu0
  %206 = vmatprep.mubr.f32.mxu0 0.0
  %207 = vmatmul.mubr.f32.gmra.mrb[0].mxu0 %v109
  %v208 = vpop.f32.mrb[0].mxu0
  %v209 = vadd.f32 %v76, %v208
  %v210 = vpop.f32.mrb[0].mxu0
  %211 = vmatprep.mubr.f32.mxu0 0.0
  %212 = vmatmul.mubr.f32.gmra.mrb[0].mxu0 %v112
  %v213 = vpop.f32.mrb[0].mxu0
  %v214 = vadd.f32 %v81, %v213
  %v215 = vpop.f32.mrb[0].mxu0
  %216 = vmatprep.mubr.f32.mxu0 0.0
  %217 = vmatmul.mubr.f32.gmra.mrb[0].mxu0 %v115
  %v218 = vpop.f32.mrb[0].mxu0
  %v219 = vadd.f32 %v86, %v218
  %v220 = vpop.f32.mrb[0].mxu0
  %221 = vmatprep.mubr.f32.mxu0 0.0
  %222 = vmatmul.mubr.f32.gmra.mrb[0].mxu0 %v118
  %v223 = vpop.f32.mrb[0].mxu0
  %v224 = vadd.f32 %v91, %v223
  %v225 = vpop.f32.mrb[0].mxu0
  %226 = vmatprep.mubr.f32.mxu0 0.0
  %227 = vmatmul.mubr.f32.gmra.mrb[0].mxu0 %v121
  %v228 = vpop.f32.mrb[0].mxu0
  %v229 = vadd.f32 %v96, %v228
  %v230 = vpop.f32.mrb[0].mxu0
  %231 = vdwg.mxu0
  %v232 = vmax.f32 %v194, 0.0
  %v233 = vmax.f32 %v199, 0.0
  %v234 = vmax.f32 %v204, 0.0
  %v235 = vmax.f32 %v209, 0.0
  %v236 = vmax.f32 %v214, 0.0
  %v237 = vmax.f32 %v219, 0.0
  %v238 = vmax.f32 %v224, 0.0
  %v239 = vmax.f32 %v229, 0.0
  %v240 = vld [vmem:[%s3] sm:$0xff]
  %v241 = vld [vmem:[%s3 + $0x8] sm:$0xff]
  %v242 = vld [vmem:[%s3 + $0x10] sm:$0xff]
  %v243 = vld [vmem:[%s3 + $0x18] sm:$0xff]
  %v244 = vld [vmem:[%s3 + $0x20] sm:$0xff]
  %v245 = vld [vmem:[%s3 + $0x28] sm:$0xff]
  %v246 = vld [vmem:[%s3 + $0x30] sm:$0xff]
  %v247 = vld [vmem:[%s3 + $0x38] sm:$0xf]
  %v248 = vld [vmem:[%s4] sm:$0xff]
  %v249 = vld [vmem:[%s4 + $0x8] sm:$0xff]
  %v250 = vld [vmem:[%s4 + $0x10] sm:$0xff]
  %v251 = vld [vmem:[%s4 + $0x18] sm:$0xff]
  %v252 = vld [vmem:[%s4 + $0x20] sm:$0xff]
  %v253 = vld [vmem:[%s4 + $0x28] sm:$0xff]
  %v254 = vld [vmem:[%s4 + $0x30] sm:$0xff]
  %v255 = vld [vmem:[%s4 + $0x38] sm:$0xf]
  %257 = vset.pattern.permute.xlu0 0
  %258 = vperm.xlu0 %257, %v248
  %v259 = vpop.permute.xlu0 %258
  %262 = vset.pattern.permute.xlu0 0
  %263 = vperm.xlu0 %262, %v249
  %v264 = vpop.permute.xlu0 %263
  %267 = vset.pattern.permute.xlu0 0
  %268 = vperm.xlu0 %267, %v250
  %v269 = vpop.permute.xlu0 %268
  %272 = vset.pattern.permute.xlu0 0
  %273 = vperm.xlu0 %272, %v251
  %v274 = vpop.permute.xlu0 %273
  %277 = vset.pattern.permute.xlu0 0
  %278 = vperm.xlu0 %277, %v252
  %v279 = vpop.permute.xlu0 %278
  %282 = vset.pattern.permute.xlu0 0
  %283 = vperm.xlu0 %282, %v253
  %v284 = vpop.permute.xlu0 %283
  %287 = vset.pattern.permute.xlu0 0
  %288 = vperm.xlu0 %287, %v254
  %v289 = vpop.permute.xlu0 %288
  %292 = vset.pattern.permute.xlu0 0
  %293 = vperm.xlu0 %292, %v255
  %v294 = vpop.permute.xlu0 %293
  %vm296 = vcmask 490496
  %v298 = vsel %vm296, %v240, 0
  %v301 = vsel %vm296, %v241, 0
  %v304 = vsel %vm296, %v242, 0
  %v307 = vsel %vm296, %v243, 0
  %v310 = vsel %vm296, %v244, 0
  %v313 = vsel %vm296, %v245, 0
  %v316 = vsel %vm296, %v246, 0
  %v319 = vsel %vm296, %v247, 0
  %vm321 = vcmask 1043456
  %v323 = vsel %vm321, %v239, 0
  %325 = vmatprep.subr.mxu0 0.0
  %326 = vmatpush1.msra.mxu0 %v232
  %327 = vmatprep.subr.mxu0 0.0
  %328 = vmatpush1.msra.mxu0 %v233
  %329 = vmatprep.subr.mxu0 0.0
  %330 = vmatpush1.msra.mxu0 %v234
  %331 = vmatprep.subr.mxu0 0.0
  %332 = vmatpush1.msra.mxu0 %v235
  %333 = vmatprep.subr.mxu0 0.0
  %334 = vmatpush1.msra.mxu0 %v236
  %335 = vmatprep.subr.mxu0 0.0
  %336 = vmatpush1.msra.mxu0 %v237
  %337 = vmatprep.subr.mxu0 0.0
  %338 = vmatpush1.msra.mxu0 %v238
  %339 = vmatprep.subr.mxu0 0.0
  %340 = vmatpush1.msra.mxu0 %v323
  %341 = vmatprep.subr.mxu0 0.0
  %342 = vmatpush1.msra.mxu0 0.0
  %343 = vmatprep.subr.mxu0 0.0
  %344 = vmatpush1.msra.mxu0 0.0
  %345 = vmatprep.subr.mxu0 0.0
  %346 = vmatpush1.msra.mxu0 0.0
  %347 = vmatprep.subr.mxu0 0.0
  %348 = vmatpush1.msra.mxu0 0.0
  %349 = vmatprep.subr.mxu0 0.0
  %350 = vmatpush1.msra.mxu0 0.0
  %351 = vmatprep.subr.mxu0 0.0
  %352 = vmatpush1.msra.mxu0 0.0
  %353 = vmatprep.subr.mxu0 0.0
  %354 = vmatpush1.msra.mxu0 0.0
  %355 = vmatprep.subr.mxu0 0.0
  %356 = vmatpush1.msra.mxu0 0.0
  %357 = vmatprep.subr.mxu0 0.0
  %358 = vmatpush1.msra.mxu0 0.0
  %359 = vmatprep.subr.mxu0 0.0
  %360 = vmatpush1.msra.mxu0 0.0
  %361 = vmatprep.subr.mxu0 0.0
  %362 = vmatpush1.msra.mxu0 0.0
  %363 = vmatprep.subr.mxu0 0.0
  %364 = vmatpush1.msra.mxu0 0.0
  %365 = vmatprep.subr.mxu0 0.0
  %366 = vmatpush1.msra.mxu0 0.0
  %367 = vmatprep.subr.mxu0 0.0
  %368 = vmatpush1.msra.mxu0 0.0
  %369 = vmatprep.subr.mxu0 0.0
  %370 = vmatpush1.msra.mxu0 0.0
  %371 = vmatprep.subr.mxu0 0.0
  %372 = vmatpush1.msra.mxu0 0.0
  %373 = vmatprep.subr.mxu0 0.0
  %374 = vmatpush1.msra.mxu0 0.0
  %375 = vmatprep.subr.mxu0 0.0
  %376 = vmatpush1.msra.mxu0 0.0
  %377 = vmatprep.subr.mxu0 0.0
  %378 = vmatpush1.msra.mxu0 0.0
  %379 = vmatprep.subr.mxu0 0.0
  %380 = vmatpush1.msra.mxu0 0.0
  %381 = vmatprep.subr.mxu0 0.0
  %382 = vmatpush1.msra.mxu0 0.0
  %383 = vmatprep.subr.mxu0 0.0
  %384 = vmatpush1.msra.mxu0 0.0
  %385 = vmatprep.subr.mxu0 0.0
  %386 = vmatpush1.msra.mxu0 0.0
  %387 = vmatprep.subr.mxu0 0.0
  %388 = vmatpush1.msra.mxu0 0.0
  %389 = vmatprep.mubr.f32.mxu0 0.0
  %390 = vmatmul.mubr.f32.gmra.mrb[0].mxu0 %v298
  %v391 = vpop.f32.mrb[0].mxu0
  %v392 = vadd.f32 %v259, %v391
  %v393 = vpop.f32.mrb[0].mxu0
  %394 = vmatprep.mubr.f32.mxu0 0.0
  %395 = vmatmul.mubr.f32.gmra.mrb[0].mxu0 %v301
  %v396 = vpop.f32.mrb[0].mxu0
  %v397 = vadd.f32 %v264, %v396
  %v398 = vpop.f32.mrb[0].mxu0
  %399 = vmatprep.mubr.f32.mxu0 0.0
  %400 = vmatmul.mubr.f32.gmra.mrb[0].mxu0 %v304
  %v401 = vpop.f32.mrb[0].mxu0
  %v402 = vadd.f32 %v269, %v401
  %v403 = vpop.f32.mrb[0].mxu0
  %404 = vmatprep.mubr.f32.mxu0 0.0
  %405 = vmatmul.mubr.f32.gmra.mrb[0].mxu0 %v307
  %v406 = vpop.f32.mrb[0].mxu0
  %v407 = vadd.f32 %v274, %v406
  %v408 = vpop.f32.mrb[0].mxu0
  %409 = vmatprep.mubr.f32.mxu0 0.0
  %410 = vmatmul.mubr.f32.gmra.mrb[0].mxu0 %v310
  %v411 = vpop.f32.mrb[0].mxu0
  %v412 = vadd.f32 %v279, %v411
  %v413 = vpop.f32.mrb[0].mxu0
  %414 = vmatprep.mubr.f32.mxu0 0.0
  %415 = vmatmul.mubr.f32.gmra.mrb[0].mxu0 %v313
  %v416 = vpop.f32.mrb[0].mxu0
  %v417 = vadd.f32 %v284, %v416
  %v418 = vpop.f32.mrb[0].mxu0
  %419 = vmatprep.mubr.f32.mxu0 0.0
  %420 = vmatmul.mubr.f32.gmra.mrb[0].mxu0 %v316
  %v421 = vpop.f32.mrb[0].mxu0
  %v422 = vadd.f32 %v289, %v421
  %v423 = vpop.f32.mrb[0].mxu0
  %424 = vmatprep.mubr.f32.mxu0 0.0
  %425 = vmatmul.mubr.f32.gmra.mrb[0].mxu0 %v319
  %v426 = vpop.f32.mrb[0].mxu0
  %v427 = vadd.f32 %v294, %v426
  %v428 = vpop.f32.mrb[0].mxu0
  %429 = vdwg.mxu0
  %v430 = vmax.f32 %v392, 0.0
  %v431 = vmax.f32 %v397, 0.0
  %v432 = vmax.f32 %v402, 0.0
  %v433 = vmax.f32 %v407, 0.0
  %v434 = vmax.f32 %v412, 0.0
  %v435 = vmax.f32 %v417, 0.0
  %v436 = vmax.f32 %v422, 0.0
  %v437 = vmax.f32 %v427, 0.0
  %v438 = vld [vmem:[%s5] sm:$0xff]
  %v439 = vld [vmem:[%s5 + $0x8] sm:$0xff]
  %v440 = vld [vmem:[%s5 + $0x10] sm:$0xff]
  %v441 = vld [vmem:[%s5 + $0x18] sm:$0xff]
  %v442 = vld [vmem:[%s5 + $0x20] sm:$0xff]
  %v443 = vld [vmem:[%s5 + $0x28] sm:$0xff]
  %v444 = vld [vmem:[%s5 + $0x30] sm:$0xff]
  %v445 = vld [vmem:[%s5 + $0x38] sm:$0xf]
  %v446 = vld [vmem:[%s6] sm:$0xff]
  %v447 = vld [vmem:[%s6 + $0x8] sm:$0xff]
  %v448 = vld [vmem:[%s6 + $0x10] sm:$0xff]
  %v449 = vld [vmem:[%s6 + $0x18] sm:$0xff]
  %v450 = vld [vmem:[%s6 + $0x20] sm:$0xff]
  %v451 = vld [vmem:[%s6 + $0x28] sm:$0xff]
  %v452 = vld [vmem:[%s6 + $0x30] sm:$0xff]
  %v453 = vld [vmem:[%s6 + $0x38] sm:$0xf]
  %455 = vset.pattern.permute.xlu0 0
  %456 = vperm.xlu0 %455, %v446
  %v457 = vpop.permute.xlu0 %456
  %460 = vset.pattern.permute.xlu0 0
  %461 = vperm.xlu0 %460, %v447
  %v462 = vpop.permute.xlu0 %461
  %465 = vset.pattern.permute.xlu0 0
  %466 = vperm.xlu0 %465, %v448
  %v467 = vpop.permute.xlu0 %466
  %470 = vset.pattern.permute.xlu0 0
  %471 = vperm.xlu0 %470, %v449
  %v472 = vpop.permute.xlu0 %471
  %475 = vset.pattern.permute.xlu0 0
  %476 = vperm.xlu0 %475, %v450
  %v477 = vpop.permute.xlu0 %476
  %480 = vset.pattern.permute.xlu0 0
  %481 = vperm.xlu0 %480, %v451
  %v482 = vpop.permute.xlu0 %481
  %485 = vset.pattern.permute.xlu0 0
  %486 = vperm.xlu0 %485, %v452
  %v487 = vpop.permute.xlu0 %486
  %490 = vset.pattern.permute.xlu0 0
  %491 = vperm.xlu0 %490, %v453
  %v492 = vpop.permute.xlu0 %491
  %v495 = vsel %vm296, %v438, 0
  %v498 = vsel %vm296, %v439, 0
  %v501 = vsel %vm296, %v440, 0
  %v504 = vsel %vm296, %v441, 0
  %v507 = vsel %vm296, %v442, 0
  %v510 = vsel %vm296, %v443, 0
  %v513 = vsel %vm296, %v444, 0
  %v516 = vsel %vm296, %v445, 0
  %v519 = vsel %vm321, %v437, 0
  %521 = vmatprep.subr.mxu0 0.0
  %522 = vmatpush1.msra.mxu0 %v430
  %523 = vmatprep.subr.mxu0 0.0
  %524 = vmatpush1.msra.mxu0 %v431
  %525 = vmatprep.subr.mxu0 0.0
  %526 = vmatpush1.msra.mxu0 %v432
  %527 = vmatprep.subr.mxu0 0.0
  %528 = vmatpush1.msra.mxu0 %v433
  %529 = vmatprep.subr.mxu0 0.0
  %530 = vmatpush1.msra.mxu0 %v434
  %531 = vmatprep.subr.mxu0 0.0
  %532 = vmatpush1.msra.mxu0 %v435
  %533 = vmatprep.subr.mxu0 0.0
  %534 = vmatpush1.msra.mxu0 %v436
  %535 = vmatprep.subr.mxu0 0.0
  %536 = vmatpush1.msra.mxu0 %v519
  %537 = vmatprep.subr.mxu0 0.0
  %538 = vmatpush1.msra.mxu0 0.0
  %539 = vmatprep.subr.mxu0 0.0
  %540 = vmatpush1.msra.mxu0 0.0
  %541 = vmatprep.subr.mxu0 0.0
  %542 = vmatpush1.msra.mxu0 0.0
  %543 = vmatprep.subr.mxu0 0.0
  %544 = vmatpush1.msra.mxu0 0.0
  %545 = vmatprep.subr.mxu0 0.0
  %546 = vmatpush1.msra.mxu0 0.0
  %547 = vmatprep.subr.mxu0 0.0
  %548 = vmatpush1.msra.mxu0 0.0
  %549 = vmatprep.subr.mxu0 0.0
  %550 = vmatpush1.msra.mxu0 0.0
  %551 = vmatprep.subr.mxu0 0.0
  %552 = vmatpush1.msra.mxu0 0.0
  %553 = vmatprep.subr.mxu0 0.0
  %554 = vmatpush1.msra.mxu0 0.0
  %555 = vmatprep.subr.mxu0 0.0
  %556 = vmatpush1.msra.mxu0 0.0
  %557 = vmatprep.subr.mxu0 0.0
  %558 = vmatpush1.msra.mxu0 0.0
  %559 = vmatprep.subr.mxu0 0.0
  %560 = vmatpush1.msra.mxu0 0.0
  %561 = vmatprep.subr.mxu0 0.0
  %562 = vmatpush1.msra.mxu0 0.0
  %563 = vmatprep.subr.mxu0 0.0
  %564 = vmatpush1.msra.mxu0 0.0
  %565 = vmatprep.subr.mxu0 0.0
  %566 = vmatpush1.msra.mxu0 0.0
  %567 = vmatprep.subr.mxu0 0.0
  %568 = vmatpush1.msra.mxu0 0.0
  %569 = vmatprep.subr.mxu0 0.0
  %570 = vmatpush1.msra.mxu0 0.0
  %571 = vmatprep.subr.mxu0 0.0
  %572 = vmatpush1.msra.mxu0 0.0
  %573 = vmatprep.subr.mxu0 0.0
  %574 = vmatpush1.msra.mxu0 0.0
  %575 = vmatprep.subr.mxu0 0.0
  %576 = vmatpush1.msra.mxu0 0.0
  %577 = vmatprep.subr.mxu0 0.0
  %578 = vmatpush1.msra.mxu0 0.0
  %579 = vmatprep.subr.mxu0 0.0
  %580 = vmatpush1.msra.mxu0 0.0
  %581 = vmatprep.subr.mxu0 0.0
  %582 = vmatpush1.msra.mxu0 0.0
  %583 = vmatprep.subr.mxu0 0.0
  %584 = vmatpush1.msra.mxu0 0.0
  %585 = vmatprep.mubr.f32.mxu0 0.0
  %586 = vmatmul.mubr.f32.gmra.mrb[0].mxu0 %v495
  %v587 = vpop.f32.mrb[0].mxu0
  %v588 = vadd.f32 %v457, %v587
  %v589 = vpop.f32.mrb[0].mxu0
  %590 = vmatprep.mubr.f32.mxu0 0.0
  %591 = vmatmul.mubr.f32.gmra.mrb[0].mxu0 %v498
  %v592 = vpop.f32.mrb[0].mxu0
  %v593 = vadd.f32 %v462, %v592
  %v594 = vpop.f32.mrb[0].mxu0
  %595 = vmatprep.mubr.f32.mxu0 0.0
  %596 = vmatmul.mubr.f32.gmra.mrb[0].mxu0 %v501
  %v597 = vpop.f32.mrb[0].mxu0
  %v598 = vadd.f32 %v467, %v597
  %v599 = vpop.f32.mrb[0].mxu0
  %600 = vmatprep.mubr.f32.mxu0 0.0
  %601 = vmatmul.mubr.f32.gmra.mrb[0].mxu0 %v504
  %v602 = vpop.f32.mrb[0].mxu0
  %v603 = vadd.f32 %v472, %v602
  %v604 = vpop.f32.mrb[0].mxu0
  %605 = vmatprep.mubr.f32.mxu0 0.0
  %606 = vmatmul.mubr.f32.gmra.mrb[0].mxu0 %v507
  %v607 = vpop.f32.mrb[0].mxu0
  %v608 = vadd.f32 %v477, %v607
  %v609 = vpop.f32.mrb[0].mxu0
  %610 = vmatprep.mubr.f32.mxu0 0.0
  %611 = vmatmul.mubr.f32.gmra.mrb[0].mxu0 %v510
  %v612 = vpop.f32.mrb[0].mxu0
  %v613 = vadd.f32 %v482, %v612
  %v614 = vpop.f32.mrb[0].mxu0
  %615 = vmatprep.mubr.f32.mxu0 0.0
  %616 = vmatmul.mubr.f32.gmra.mrb[0].mxu0 %v513
  %v617 = vpop.f32.mrb[0].mxu0
  %v618 = vadd.f32 %v487, %v617
  %v619 = vpop.f32.mrb[0].mxu0
  %620 = vmatprep.mubr.f32.mxu0 0.0
  %621 = vmatmul.mubr.f32.gmra.mrb[0].mxu0 %v516
  %v622 = vpop.f32.mrb[0].mxu0
  %v623 = vadd.f32 %v492, %v622
  %v624 = vpop.f32.mrb[0].mxu0
  %625 = vdwg.mxu0
  %v626 = vmax.f32 %v588, 0.0
  %v627 = vmax.f32 %v593, 0.0
  %v628 = vmax.f32 %v598, 0.0
  %v629 = vmax.f32 %v603, 0.0
  %v630 = vmax.f32 %v608, 0.0
  %v631 = vmax.f32 %v613, 0.0
  %v632 = vmax.f32 %v618, 0.0
  %v633 = vmax.f32 %v623, 0.0
  %v634 = vld [vmem:[%s7] sm:$0xff]
  %v635 = vld [vmem:[%s7 + $0x8] sm:$0xff]
  %v636 = vld [vmem:[%s7 + $0x10] sm:$0xff]
  %v637 = vld [vmem:[%s7 + $0x18] sm:$0xff]
  %v638 = vld [vmem:[%s7 + $0x20] sm:$0xff]
  %v639 = vld [vmem:[%s7 + $0x28] sm:$0xff]
  %v640 = vld [vmem:[%s7 + $0x30] sm:$0x3]
  %v641 = vld [vmem:[%s8] sm:$0xff]
  %v642 = vld [vmem:[%s8 + $0x8] sm:$0xff]
  %v643 = vld [vmem:[%s8 + $0x10] sm:$0xff]
  %v644 = vld [vmem:[%s8 + $0x18] sm:$0xff]
  %v645 = vld [vmem:[%s8 + $0x20] sm:$0xff]
  %v646 = vld [vmem:[%s8 + $0x28] sm:$0xff]
  %v647 = vld [vmem:[%s8 + $0x30] sm:$0x3]
  %649 = vset.pattern.permute.xlu0 0
  %650 = vperm.xlu0 %649, %v641
  %v651 = vpop.permute.xlu0 %650
  %654 = vset.pattern.permute.xlu0 0
  %655 = vperm.xlu0 %654, %v642
  %v656 = vpop.permute.xlu0 %655
  %659 = vset.pattern.permute.xlu0 0
  %660 = vperm.xlu0 %659, %v643
  %v661 = vpop.permute.xlu0 %660
  %664 = vset.pattern.permute.xlu0 0
  %665 = vperm.xlu0 %664, %v644
  %v666 = vpop.permute.xlu0 %665
  %669 = vset.pattern.permute.xlu0 0
  %670 = vperm.xlu0 %669, %v645
  %v671 = vpop.permute.xlu0 %670
  %674 = vset.pattern.permute.xlu0 0
  %675 = vperm.xlu0 %674, %v646
  %v676 = vpop.permute.xlu0 %675
  %679 = vset.pattern.permute.xlu0 0
  %680 = vperm.xlu0 %679, %v647
  %v681 = vpop.permute.xlu0 %680
  %v684 = vsel %vm296, %v634, 0
  %v687 = vsel %vm296, %v635, 0
  %v690 = vsel %vm296, %v636, 0
  %v693 = vsel %vm296, %v637, 0
  %v696 = vsel %vm296, %v638, 0
  %v699 = vsel %vm296, %v639, 0
  %v702 = vsel %vm296, %v640, 0
  %v705 = vsel %vm321, %v633, 0
  %707 = vmatprep.subr.mxu0 0.0
  %708 = vmatpush1.msra.mxu0 %v626
  %709 = vmatprep.subr.mxu0 0.0
  %710 = vmatpush1.msra.mxu0 %v627
  %711 = vmatprep.subr.mxu0 0.0
  %712 = vmatpush1.msra.mxu0 %v628
  %713 = vmatprep.subr.mxu0 0.0
  %714 = vmatpush1.msra.mxu0 %v629
  %715 = vmatprep.subr.mxu0 0.0
  %716 = vmatpush1.msra.mxu0 %v630
  %717 = vmatprep.subr.mxu0 0.0
  %718 = vmatpush1.msra.mxu0 %v631
  %719 = vmatprep.subr.mxu0 0.0
  %720 = vmatpush1.msra.mxu0 %v632
  %721 = vmatprep.subr.mxu0 0.0
  %722 = vmatpush1.msra.mxu0 %v705
  %723 = vmatprep.subr.mxu0 0.0
  %724 = vmatpush1.msra.mxu0 0.0
  %725 = vmatprep.subr.mxu0 0.0
  %726 = vmatpush1.msra.mxu0 0.0
  %727 = vmatprep.subr.mxu0 0.0
  %728 = vmatpush1.msra.mxu0 0.0
  %729 = vmatprep.subr.mxu0 0.0
  %730 = vmatpush1.msra.mxu0 0.0
  %731 = vmatprep.subr.mxu0 0.0
  %732 = vmatpush1.msra.mxu0 0.0
  %733 = vmatprep.subr.mxu0 0.0
  %734 = vmatpush1.msra.mxu0 0.0
  %735 = vmatprep.subr.mxu0 0.0
  %736 = vmatpush1.msra.mxu0 0.0
  %737 = vmatprep.subr.mxu0 0.0
  %738 = vmatpush1.msra.mxu0 0.0
  %739 = vmatprep.subr.mxu0 0.0
  %740 = vmatpush1.msra.mxu0 0.0
  %741 = vmatprep.subr.mxu0 0.0
  %742 = vmatpush1.msra.mxu0 0.0
  %743 = vmatprep.subr.mxu0 0.0
  %744 = vmatpush1.msra.mxu0 0.0
  %745 = vmatprep.subr.mxu0 0.0
  %746 = vmatpush1.msra.mxu0 0.0
  %747 = vmatprep.subr.mxu0 0.0
  %748 = vmatpush1.msra.mxu0 0.0
  %749 = vmatprep.subr.mxu0 0.0
  %750 = vmatpush1.msra.mxu0 0.0
  %751 = vmatprep.subr.mxu0 0.0
  %752 = vmatpush1.msra.mxu0 0.0
  %753 = vmatprep.subr.mxu0 0.0
  %754 = vmatpush1.msra.mxu0 0.0
  %755 = vmatprep.subr.mxu0 0.0
  %756 = vmatpush1.msra.mxu0 0.0
  %757 = vmatprep.subr.mxu0 0.0
  %758 = vmatpush1.msra.mxu0 0.0
  %759 = vmatprep.subr.mxu0 0.0
  %760 = vmatpush1.msra.mxu0 0.0
  %761 = vmatprep.subr.mxu0 0.0
  %762 = vmatpush1.msra.mxu0 0.0
  %763 = vmatprep.subr.mxu0 0.0
  %764 = vmatpush1.msra.mxu0 0.0
  %765 = vmatprep.subr.mxu0 0.0
  %766 = vmatpush1.msra.mxu0 0.0
  %767 = vmatprep.subr.mxu0 0.0
  %768 = vmatpush1.msra.mxu0 0.0
  %769 = vmatprep.subr.mxu0 0.0
  %770 = vmatpush1.msra.mxu0 0.0
  %771 = vmatprep.mubr.f32.mxu0 0.0
  %772 = vmatmul.mubr.f32.gmra.mrb[0].mxu0 %v684
  %v773 = vpop.f32.mrb[0].mxu0
  %v774 = vadd.f32 %v651, %v773
  %v775 = vpop.f32.mrb[0].mxu0
  %776 = vmatprep.mubr.f32.mxu0 0.0
  %777 = vmatmul.mubr.f32.gmra.mrb[0].mxu0 %v687
  %v778 = vpop.f32.mrb[0].mxu0
  %v779 = vadd.f32 %v656, %v778
  %v780 = vpop.f32.mrb[0].mxu0
  %781 = vmatprep.mubr.f32.mxu0 0.0
  %782 = vmatmul.mubr.f32.gmra.mrb[0].mxu0 %v690
  %v783 = vpop.f32.mrb[0].mxu0
  %v784 = vadd.f32 %v661, %v783
  %v785 = vpop.f32.mrb[0].mxu0
  %786 = vmatprep.mubr.f32.mxu0 0.0
  %787 = vmatmul.mubr.f32.gmra.mrb[0].mxu0 %v693
  %v788 = vpop.f32.mrb[0].mxu0
  %v789 = vadd.f32 %v666, %v788
  %v790 = vpop.f32.mrb[0].mxu0
  %791 = vmatprep.mubr.f32.mxu0 0.0
  %792 = vmatmul.mubr.f32.gmra.mrb[0].mxu0 %v696
  %v793 = vpop.f32.mrb[0].mxu0
  %v794 = vadd.f32 %v671, %v793
  %v795 = vpop.f32.mrb[0].mxu0
  %796 = vmatprep.mubr.f32.mxu0 0.0
  %797 = vmatmul.mubr.f32.gmra.mrb[0].mxu0 %v699
  %v798 = vpop.f32.mrb[0].mxu0
  %v799 = vadd.f32 %v676, %v798
  %v800 = vpop.f32.mrb[0].mxu0
  %801 = vmatprep.mubr.f32.mxu0 0.0
  %802 = vmatmul.mubr.f32.gmra.mrb[0].mxu0 %v702
  %v803 = vpop.f32.mrb[0].mxu0
  %v804 = vadd.f32 %v681, %v803
  %v805 = vpop.f32.mrb[0].mxu0
  %806 = vdwg.mxu0
  %v807 = vmax.f32 %v774, 0.0
  %v808 = vmax.f32 %v779, 0.0
  %v809 = vmax.f32 %v784, 0.0
  %v810 = vmax.f32 %v789, 0.0
  %v811 = vmax.f32 %v794, 0.0
  %v812 = vmax.f32 %v799, 0.0
  %v813 = vmax.f32 %v804, 0.0
  %v814 = vld [vmem:[%s9] sm:$0x1]
  %v815 = vld [vmem:[#allocation2] sm:$0x1]
  %817 = vset.pattern.permute.xlu0 0
  %818 = vperm.xlu0 %817, %v815
  %v819 = vpop.permute.xlu0 %818
  %v821 = vlaneseq
  %v822 = vshrl.u32 %v821, 7
  %v823 = vsub.s32 0, %v822
  %v824 = vrot.slane %v819, %v823
  %vm825 = vcmask 408576
  %v827 = vsel %vm825, %v814, 0
  %vm829 = vcmask 1041408
  %v831 = vsel %vm829, %v813, 0
  %833 = vmatprep.subr.mxu0 0.0
  %834 = vmatpush1.msra.mxu0 %v807
  %835 = vmatprep.subr.mxu0 0.0
  %836 = vmatpush1.msra.mxu0 %v808
  %837 = vmatprep.subr.mxu0 0.0
  %838 = vmatpush1.msra.mxu0 %v809
  %839 = vmatprep.subr.mxu0 0.0
  %840 = vmatpush1.msra.mxu0 %v810
  %841 = vmatprep.subr.mxu0 0.0
  %842 = vmatpush1.msra.mxu0 %v811
  %843 = vmatprep.subr.mxu0 0.0
  %844 = vmatpush1.msra.mxu0 %v812
  %845 = vmatprep.subr.mxu0 0.0
  %846 = vmatpush1.msra.mxu0 %v831
  %847 = vmatprep.subr.mxu0 0.0
  %848 = vmatpush1.msra.mxu0 0.0
  %849 = vmatprep.subr.mxu0 0.0
  %850 = vmatpush1.msra.mxu0 0.0
  %851 = vmatprep.subr.mxu0 0.0
  %852 = vmatpush1.msra.mxu0 0.0
  %853 = vmatprep.subr.mxu0 0.0
  %854 = vmatpush1.msra.mxu0 0.0
  %855 = vmatprep.subr.mxu0 0.0
  %856 = vmatpush1.msra.mxu0 0.0
  %857 = vmatprep.subr.mxu0 0.0
  %858 = vmatpush1.msra.mxu0 0.0
  %859 = vmatprep.subr.mxu0 0.0
  %860 = vmatpush1.msra.mxu0 0.0
  %861 = vmatprep.subr.mxu0 0.0
  %862 = vmatpush1.msra.mxu0 0.0
  %863 = vmatprep.subr.mxu0 0.0
  %864 = vmatpush1.msra.mxu0 0.0
  %865 = vmatprep.subr.mxu0 0.0
  %866 = vmatpush1.msra.mxu0 0.0
  %867 = vmatprep.subr.mxu0 0.0
  %868 = vmatpush1.msra.mxu0 0.0
  %869 = vmatprep.subr.mxu0 0.0
  %870 = vmatpush1.msra.mxu0 0.0
  %871 = vmatprep.subr.mxu0 0.0
  %872 = vmatpush1.msra.mxu0 0.0
  %873 = vmatprep.subr.mxu0 0.0
  %874 = vmatpush1.msra.mxu0 0.0
  %875 = vmatprep.subr.mxu0 0.0
  %876 = vmatpush1.msra.mxu0 0.0
  %877 = vmatprep.subr.mxu0 0.0
  %878 = vmatpush1.msra.mxu0 0.0
  %879 = vmatprep.subr.mxu0 0.0
  %880 = vmatpush1.msra.mxu0 0.0
  %881 = vmatprep.subr.mxu0 0.0
  %882 = vmatpush1.msra.mxu0 0.0
  %883 = vmatprep.subr.mxu0 0.0
  %884 = vmatpush1.msra.mxu0 0.0
  %885 = vmatprep.subr.mxu0 0.0
  %886 = vmatpush1.msra.mxu0 0.0
  %887 = vmatprep.subr.mxu0 0.0
  %888 = vmatpush1.msra.mxu0 0.0
  %889 = vmatprep.subr.mxu0 0.0
  %890 = vmatpush1.msra.mxu0 0.0
  %891 = vmatprep.subr.mxu0 0.0
  %892 = vmatpush1.msra.mxu0 0.0
  %893 = vmatprep.subr.mxu0 0.0
  %894 = vmatpush1.msra.mxu0 0.0
  %895 = vmatprep.subr.mxu0 0.0
  %896 = vmatpush1.msra.mxu0 0.0
  %897 = vmatprep.mubr.f32.mxu0 0.0
  %898 = vmatmul.mubr.f32.gmra.mrb[0].mxu0 %v827
  %v899 = vpop.f32.mrb[0].mxu0
  %v900 = vadd.f32 %v824, %v899
  %v901 = vpop.f32.mrb[0].mxu0
  %902 = vdwg.mxu0
  %903 = vst [vmem:[%s11] sm:$0x1] %v900
  // Predicated region
  $region46: #{classifier_forward.1} parent=0 // pred_check
    _
  $region47: #{classifier_forward.1} parent=0 // pred_check_branch
    %905 = sbr.rel (0) target = $region49
  $region48: #{classifier_forward.1} parent=0 // pred_region
    _
  $region49: #{classifier_forward.1} parent=0 // pred_fallthru
    _
  // Predicated region
  $region50: #{classifier_forward.1} parent=0 // pred_check
    _
  $region51: #{classifier_forward.1} parent=0 // pred_check_branch
    %907 = sbr.rel (0) target = $region53
  $region52: #{classifier_forward.1} parent=0 // pred_region
    _
  $region53: #{classifier_forward.1} parent=0 // pred_fallthru
    _

</llo_original>
